<compile_context>
chip_gen: v7x
topology: tpu7x:2x2x1
jax: 0.10.0
libtpu: 0.0.40
codegen_flags: <defaults>
</compile_context>

<pallas_src>
import math

import jax
import jax.numpy as jnp
from jax.experimental import pallas as pl
from jax.experimental.pallas import tpu as pltpu

_LANE = 128       # vreg lane width
_SUBLANE = 8      # f32 sublane count
_HEAD_ROWS = 8    # fused-head output rows: 0 = value, 1 = policy, 2..7 padding


def _round_up(x, m):
    return ((x + m - 1) // m) * m


def _mlp_kernel(x_ref, w1_ref, b1_ref, w2_ref, b2_ref, whT_ref, bh_ref, out_ref):
    x = x_ref[...]

    # fc1 + ReLU
    h1 = jnp.dot(x, w1_ref[...], preferred_element_type=jnp.float32) + b1_ref[...]
    h1 = jnp.maximum(h1, 0.0)

    # fc2 + ReLU
    h2 = jnp.dot(h1, w2_ref[...], preferred_element_type=jnp.float32) + b2_ref[...]
    h2 = jnp.maximum(h2, 0.0)

    # Fused transposed heads: z[r, b] = sum_k whT[r, k] * h2[b, k]  ->  (8, TB).
    z = jax.lax.dot_general(
        whT_ref[...], h2,
        dimension_numbers=(((1,), (1,)), ((), ())),
        preferred_element_type=jnp.float32,
    ) + bh_ref[...]

    # Row 0 -> tanh (value), other rows -> sigmoid (policy lives in row 1).
    # Single EUP push: sigmoid(x) = 0.5 * tanh(x / 2) + 0.5.
    row = jax.lax.broadcasted_iota(jnp.int32, z.shape, dimension=0)
    t = jnp.tanh(jnp.where(row == 0, z, 0.5 * z))
    out_ref[...] = jnp.where(row == 0, t, 0.5 * t + 0.5)


def _choose_tiling(B):
    """Return (tile_rows, padded_batch). Tiles are sublane-aligned; multi-tile
    configs use 128-multiple tiles (lane-dense output blocks) in [256, 1024],
    with >= 2 tiles so v7x megacore gets work on both TensorCores."""
    B = max(B, 1)
    if B <= 256:
        tb = _round_up(B, _SUBLANE)
        return tb, tb
    lo = max(2, pl.cdiv(B, 1024))
    hi = max(lo, pl.cdiv(B, 256))
    best = None
    for ntiles in range(lo, hi + 1):
        tb = _round_up(pl.cdiv(B, ntiles), _LANE)
        b_pad = tb * ntiles
        key = (b_pad, ntiles)          # least padding, then fewest grid steps
        if best is None or key < best[0]:
            best = (key, tb, b_pad)
    return best[1], best[2]


def settlers_policy_value_net(x, params):
    """x: [B, input_dim] float32. params: kernel-layout params (see pad_params)."""
    B, input_dim = x.shape
    h_pad = params["w1"].shape[1]

    tb, b_pad = _choose_tiling(B)
    grid = (b_pad // tb,)

    # Minimal batch padding (single jnp.pad, no full zeros+update-slice pass);
    # feature dim keeps its natural width — block last dim == full array dim.
    if b_pad != B:
        x = jnp.pad(x, ((0, b_pad - B), (0, 0)))

    fixed = lambda i: (0, 0)  # weights/biases resident in VMEM across all tiles

    flops = 2 * b_pad * (input_dim * h_pad + h_pad * h_pad + h_pad * _HEAD_ROWS)
    weight_bytes = 4 * sum(int(p.size) for p in params.values())
    cost = pl.CostEstimate(
        flops=flops,
        transcendentals=_HEAD_ROWS * b_pad,
        bytes_accessed=4 * (b_pad * input_dim + _HEAD_ROWS * b_pad) + weight_bytes,
    )

    out = pl.pallas_call(
        _mlp_kernel,
        out_shape=jax.ShapeDtypeStruct((_HEAD_ROWS, b_pad), jnp.float32),
        grid=grid,
        in_specs=[
            pl.BlockSpec((tb, input_dim), lambda i: (i, 0)),       # x: streams
            pl.BlockSpec((input_dim, h_pad), fixed),               # w1
            pl.BlockSpec((1, h_pad), fixed),                       # b1
            pl.BlockSpec((h_pad, h_pad), fixed),                   # w2
            pl.BlockSpec((1, h_pad), fixed),                       # b2
            pl.BlockSpec((_HEAD_ROWS, h_pad), fixed),              # fused head W^T
            pl.BlockSpec((_HEAD_ROWS, 1), fixed),                  # fused head bias
        ],
        out_specs=pl.BlockSpec((_HEAD_ROWS, tb), lambda i: (0, i)),
        compiler_params=pltpu.CompilerParams(
            dimension_semantics=("parallel",),
        ),
        cost_estimate=cost,
    )(x, params["w1"], params["b1"], params["w2"], params["b2"],
      params["whT"], params["bh"])

    value = out[0, :B].reshape(B, 1)
    policy = out[1, :B].reshape(B, 1)
    return value, policy


def init_params(key, input_dim, hidden_dim=128):
    """Deterministic init mimicking PyTorch nn.Linear defaults
    (uniform(-1/sqrt(fan_in), 1/sqrt(fan_in)) for weight and bias).
    Weights stored transposed as [in, out]; biases as [1, out]. Unpadded."""
    def linear(k, fan_in, fan_out):
        kw, kb = jax.random.split(k)
        bound = 1.0 / math.sqrt(fan_in)
        w = jax.random.uniform(kw, (fan_in, fan_out), jnp.float32, -bound, bound)
        b = jax.random.uniform(kb, (1, fan_out), jnp.float32, -bound, bound)
        return w, b

    k1, k2, k3, k4 = jax.random.split(key, 4)
    w1, b1 = linear(k1, input_dim, hidden_dim)
    w2, b2 = linear(k2, hidden_dim, hidden_dim)
    wv, bv = linear(k3, hidden_dim, 1)
    wp, bp = linear(k4, hidden_dim, 1)
    return dict(w1=w1, b1=b1, w2=w2, b2=b2, wv=wv, bv=bv, wp=wp, bp=bp)


def pad_params(p):
    """Kernel-layout params: hidden dim zero-padded to 128 lanes; value/policy
    heads fused into a pre-transposed [8, hidden_pad] weight (row 0 = value,
    row 1 = policy) with an [8, 1] bias. Input dim is left unpadded."""
    input_dim, hidden_dim = p["w1"].shape
    h_pad = _round_up(hidden_dim, _LANE)

    def pad2(a, rows, cols):
        out = jnp.zeros((rows, cols), jnp.float32)
        return out.at[:a.shape[0], :a.shape[1]].set(a)

    whT = jnp.zeros((_HEAD_ROWS, h_pad), jnp.float32)
    whT = whT.at[0, :hidden_dim].set(p["wv"][:, 0])
    whT = whT.at[1, :hidden_dim].set(p["wp"][:, 0])
    bh = jnp.zeros((_HEAD_ROWS, 1), jnp.float32)
    bh = bh.at[0, 0].set(p["bv"][0, 0]).at[1, 0].set(p["bp"][0, 0])

    return dict(
        w1=pad2(p["w1"], input_dim, h_pad), b1=pad2(p["b1"], 1, h_pad),
        w2=pad2(p["w2"], h_pad, h_pad), b2=pad2(p["b2"], 1, h_pad),
        whT=whT, bh=bh,
    )


def _reference(x, p):
    """Pure-JAX reference on the unpadded params (matches the PyTorch module)."""
    h1 = jnp.maximum(x @ p["w1"] + p["b1"], 0.0)
    h2 = jnp.maximum(h1 @ p["w2"] + p["b2"], 0.0)
    value = jnp.tanh(h2 @ p["wv"] + p["bv"])
    policy = jax.nn.sigmoid(h2 @ p["wp"] + p["bp"])
    return value, policy


if __name__ == "__main__":
    key = jax.random.PRNGKey(0)
    k_x, k_p = jax.random.split(key)

    batch = 8
    input_dim = 32
    hidden_dim = 32

    x = jax.random.normal(k_x, (batch, input_dim), jnp.float32)
    raw_params = init_params(k_p, input_dim, hidden_dim)
    kernel_params = pad_params(raw_params)

    value, policy = settlers_policy_value_net(x, kernel_params)
    jax.block_until_ready((value, policy))

    v_ref, p_ref = _reference(x, raw_params)
    assert value.shape == (batch, 1) and policy.shape == (batch, 1)
    assert jnp.allclose(value, v_ref, atol=1e-5)
    assert jnp.allclose(policy, p_ref, atol=1e-5)

    print("KERNEL_OK")
</pallas_src>

<mosaic_0001>
module attributes {stable_mosaic.version = 11 : i64} {
  func.func @_mlp_kernel(%arg0: i32, %arg1: memref<8x32xf32, #tpu.memory_space<vmem>>, %arg2: memref<32x128xf32, #tpu.memory_space<vmem>>, %arg3: memref<1x128xf32, #tpu.memory_space<vmem>>, %arg4: memref<128x128xf32, #tpu.memory_space<vmem>>, %arg5: memref<1x128xf32, #tpu.memory_space<vmem>>, %arg6: memref<8x128xf32, #tpu.memory_space<vmem>>, %arg7: memref<8x1xf32, #tpu.memory_space<vmem>>, %arg8: memref<8x8xf32, #tpu.memory_space<vmem>>) attributes {dimension_semantics = [#tpu.dimension_semantics<parallel>], iteration_bounds = array<i64: 1>, scalar_prefetch = 0 : i64, scratch_operands = 0 : i64, tpu.core_type = #tpu.core_type<tc>, window_params = [{transform_indices = @transform_0, window_bounds = array<i64: 8, 32>}, {pipeline_mode = #tpu.pipeline_mode<synchronous>, transform_indices = @transform_1, window_bounds = array<i64: 32, 128>}, {pipeline_mode = #tpu.pipeline_mode<synchronous>, transform_indices = @transform_2, window_bounds = array<i64: 1, 128>}, {pipeline_mode = #tpu.pipeline_mode<synchronous>, transform_indices = @transform_3, window_bounds = array<i64: 128, 128>}, {pipeline_mode = #tpu.pipeline_mode<synchronous>, transform_indices = @transform_4, window_bounds = array<i64: 1, 128>}, {pipeline_mode = #tpu.pipeline_mode<synchronous>, transform_indices = @transform_5, window_bounds = array<i64: 8, 128>}, {pipeline_mode = #tpu.pipeline_mode<synchronous>, transform_indices = @transform_6, window_bounds = array<i64: 8, 1>}, {transform_indices = @transform_7, window_bounds = array<i64: 8, 8>}]} {
    %c0 = arith.constant 0 : index
    %c0_0 = arith.constant 0 : index
    %0 = vector.load %arg1[%c0, %c0_0] : memref<8x32xf32, #tpu.memory_space<vmem>>, vector<8x32xf32>
    %c0_1 = arith.constant 0 : index
    %c0_2 = arith.constant 0 : index
    %1 = vector.load %arg2[%c0_1, %c0_2] : memref<32x128xf32, #tpu.memory_space<vmem>>, vector<32x128xf32>
    %cst = arith.constant dense<0.000000e+00> : vector<8x128xf32>
    %2 = tpu.matmul %0, %1, %cst {dimension_numbers = #tpu.dot_dimension_numbers<[1], [0], [0], [1], [0, 0, 1, 1], [], []>} : vector<8x32xf32>, vector<32x128xf32>, vector<8x128xf32> -> vector<8x128xf32>
    %c0_3 = arith.constant 0 : index
    %c0_4 = arith.constant 0 : index
    %3 = vector.load %arg3[%c0_3, %c0_4] : memref<1x128xf32, #tpu.memory_space<vmem>>, vector<1x128xf32>
    %4 = vector.broadcast %3 : vector<1x128xf32> to vector<8x128xf32>
    %5 = arith.addf %2, %4 : vector<8x128xf32>
    %cst_5 = arith.constant 0.000000e+00 : f32
    %6 = vector.broadcast %cst_5 : f32 to vector<8x128xf32>
    %7 = arith.maximumf %5, %6 : vector<8x128xf32>
    %c0_6 = arith.constant 0 : index
    %c0_7 = arith.constant 0 : index
    %8 = vector.load %arg4[%c0_6, %c0_7] : memref<128x128xf32, #tpu.memory_space<vmem>>, vector<128x128xf32>
    %cst_8 = arith.constant dense<0.000000e+00> : vector<8x128xf32>
    %9 = tpu.matmul %7, %8, %cst_8 {dimension_numbers = #tpu.dot_dimension_numbers<[1], [0], [0], [1], [0, 0, 1, 1], [], []>} : vector<8x128xf32>, vector<128x128xf32>, vector<8x128xf32> -> vector<8x128xf32>
    %c0_9 = arith.constant 0 : index
    %c0_10 = arith.constant 0 : index
    %10 = vector.load %arg5[%c0_9, %c0_10] : memref<1x128xf32, #tpu.memory_space<vmem>>, vector<1x128xf32>
    %11 = vector.broadcast %10 : vector<1x128xf32> to vector<8x128xf32>
    %12 = arith.addf %9, %11 : vector<8x128xf32>
    %cst_11 = arith.constant 0.000000e+00 : f32
    %13 = vector.broadcast %cst_11 : f32 to vector<8x128xf32>
    %14 = arith.maximumf %12, %13 : vector<8x128xf32>
    %c0_12 = arith.constant 0 : index
    %c0_13 = arith.constant 0 : index
    %15 = vector.load %arg6[%c0_12, %c0_13] : memref<8x128xf32, #tpu.memory_space<vmem>>, vector<8x128xf32>
    %cst_14 = arith.constant dense<0.000000e+00> : vector<8x8xf32>
    %16 = tpu.matmul %15, %14, %cst_14 {dimension_numbers = #tpu.dot_dimension_numbers<[1], [1], [0], [0], [0, 0, 1, 0], [], []>} : vector<8x128xf32>, vector<8x128xf32>, vector<8x8xf32> -> vector<8x8xf32>
    %c0_15 = arith.constant 0 : index
    %c0_16 = arith.constant 0 : index
    %17 = vector.load %arg7[%c0_15, %c0_16] : memref<8x1xf32, #tpu.memory_space<vmem>>, vector<8x1xf32>
    %18 = vector.broadcast %17 : vector<8x1xf32> to vector<8x8xf32>
    %19 = arith.addf %16, %18 : vector<8x8xf32>
    %20 = tpu.iota {dimensions = array<i32: 0>} : vector<8x8xi32>
    %c0_i32 = arith.constant 0 : i32
    %21 = vector.broadcast %c0_i32 : i32 to vector<8x8xi32>
    %22 = arith.cmpi eq, %20, %21 : vector<8x8xi32>
    %cst_17 = arith.constant 5.000000e-01 : f32
    %23 = vector.broadcast %cst_17 : f32 to vector<8x8xf32>
    %24 = arith.mulf %23, %19 : vector<8x8xf32>
    %25 = arith.select %22, %19, %24 : vector<8x8xi1>, vector<8x8xf32>
    %26 = math.tanh %25 : vector<8x8xf32>
    %c0_i32_18 = arith.constant 0 : i32
    %27 = vector.broadcast %c0_i32_18 : i32 to vector<8x8xi32>
    %28 = arith.cmpi eq, %20, %27 : vector<8x8xi32>
    %cst_19 = arith.constant 5.000000e-01 : f32
    %29 = vector.broadcast %cst_19 : f32 to vector<8x8xf32>
    %30 = arith.mulf %29, %26 : vector<8x8xf32>
    %cst_20 = arith.constant 5.000000e-01 : f32
    %31 = vector.broadcast %cst_20 : f32 to vector<8x8xf32>
    %32 = arith.addf %30, %31 : vector<8x8xf32>
    %33 = arith.select %28, %26, %32 : vector<8x8xi1>, vector<8x8xf32>
    %c0_21 = arith.constant 0 : index
    %c0_22 = arith.constant 0 : index
    %34 = vector.load %arg8[%c0_21, %c0_22] : memref<8x8xf32, #tpu.memory_space<vmem>>, vector<8x8xf32>
    tpu.vector_store %arg8[%c0_21, %c0_22], %33 {strides = array<i32>} : memref<8x8xf32, #tpu.memory_space<vmem>>, vector<8x8xf32>,
    return
  }
  func.func @transform_0(%arg0: i32) -> (i32, i32) {
    %c0_i32 = arith.constant 0 : i32
    %c0_i32_0 = arith.constant 0 : i32
    return %arg0, %c0_i32 : i32, i32
  }
  func.func @transform_1(%arg0: i32) -> (i32, i32) {
    %c0_i32 = arith.constant 0 : i32
    %c0_i32_0 = arith.constant 0 : i32
    %c0_i32_1 = arith.constant 0 : i32
    return %c0_i32, %c0_i32_0 : i32, i32
  }
  func.func @transform_2(%arg0: i32) -> (i32, i32) {
    %c0_i32 = arith.constant 0 : i32
    %c0_i32_0 = arith.constant 0 : i32
    %c0_i32_1 = arith.constant 0 : i32
    return %c0_i32, %c0_i32_0 : i32, i32
  }
  func.func @transform_3(%arg0: i32) -> (i32, i32) {
    %c0_i32 = arith.constant 0 : i32
    %c0_i32_0 = arith.constant 0 : i32
    %c0_i32_1 = arith.constant 0 : i32
    return %c0_i32, %c0_i32_0 : i32, i32
  }
  func.func @transform_4(%arg0: i32) -> (i32, i32) {
    %c0_i32 = arith.constant 0 : i32
    %c0_i32_0 = arith.constant 0 : i32
    %c0_i32_1 = arith.constant 0 : i32
    return %c0_i32, %c0_i32_0 : i32, i32
  }
  func.func @transform_5(%arg0: i32) -> (i32, i32) {
    %c0_i32 = arith.constant 0 : i32
    %c0_i32_0 = arith.constant 0 : i32
    %c0_i32_1 = arith.constant 0 : i32
    return %c0_i32, %c0_i32_0 : i32, i32
  }
  func.func @transform_6(%arg0: i32) -> (i32, i32) {
    %c0_i32 = arith.constant 0 : i32
    %c0_i32_0 = arith.constant 0 : i32
    %c0_i32_1 = arith.constant 0 : i32
    return %c0_i32, %c0_i32_0 : i32, i32
  }
  func.func @transform_7(%arg0: i32) -> (i32, i32) {
    %c0_i32 = arith.constant 0 : i32
    %c0_i32_0 = arith.constant 0 : i32
    return %c0_i32, %arg0 : i32, i32
  }
}

</mosaic_0001>

<llo_original>
// kernel: tpu_custom_call.1
$region0: #{tpu_custom_call.1}
  #allocation0 [shape = 'u32[]', space=smem, size = 0x4, offset = 0x4, fixed_abs, tag = 'smem constant byte address 0x4 - core index']
  #allocation1 [shape = 'u32[144,128]{1,0:T(1,128)}', space=vmem, size = 0x12000, scoped, tag = 'internal scratch']
  %s0 = inlined_call_operand.vmem [shape: f32[8,32], index: 0, kind: input, shape index: {}]
  %s1 = inlined_call_operand.hbm [shape: f32[32,128], index: 1, kind: input, shape index: {}]
  %s2 = inlined_call_operand.hbm [shape: f32[1,128], index: 2, kind: input, shape index: {}]
  %s3 = inlined_call_operand.hbm [shape: f32[128,128], index: 3, kind: input, shape index: {}]
  %s4 = inlined_call_operand.vmem [shape: f32[1,128], index: 4, kind: input, shape index: {}]
  %s5 = inlined_call_operand.vmem [shape: f32[8,128], index: 5, kind: input, shape index: {}]
  %s6 = inlined_call_operand.vmem [shape: f32[8,1], index: 6, kind: input, shape index: {}]
  %s7 = inlined_call_operand.hbm [shape: f32[8,8], index: 7, kind: output, shape index: {}]
  %s8 = sld [smem:[#allocation0]]
  $region50: #{tpu_custom_call.1} parent=0
    _
  %s10 = ssub.s32 1, %s8
  %s11 = scalar_select 0, %s10, %s8
  $region1: #{tpu_custom_call.1} parent=0
    #allocation2 [shape = 'u8[16384]{0}', space=vmem, size = 0x4000, scoped, tag = 'input window, operand 1, single buffered']
    #allocation3 [shape = 's32[1]{0}', space=sflag, size = 0x4, scoped, tag = 'scoped memory for tpu_custom_call.1']
    #allocation4 [shape = 's32[1]{0}', space=sflag, size = 0x4, scoped, tag = 'scoped memory for tpu_custom_call.1']
    #allocation5 [shape = 'u8[512]{0}', space=vmem, size = 0x400, scoped, tag = 'input window, operand 2, single buffered']
    #allocation6 [shape = 's32[1]{0}', space=sflag, size = 0x4, scoped, tag = 'scoped memory for tpu_custom_call.1']
    #allocation7 [shape = 'u8[65536]{0}', space=vmem, size = 0x10000, scoped, tag = 'input window, operand 3, single buffered']
    #allocation8 [shape = 'u8[4096]{0}', space=vmem, size = 0x1000, scoped, tag = 'output window, operand 0, single buffered']
    %12 = vsyncpa [#allocation3], 0
    %13 = vsyncpa [#allocation6], 0
    %14 = vsyncpa [#allocation4], 0
    // Predicated region
    $region2: #{tpu_custom_call.1} parent=1 // pred_check
      _
    $region3: #{tpu_custom_call.1} parent=1 // pred_check_branch
      %16 = sbr.rel (0) target = $region5
    $region4: #{tpu_custom_call.1} parent=1 // pred_region
      _
    $region5: #{tpu_custom_call.1} parent=1 // pred_fallthru
      _
    // Predicated region
    $region6: #{tpu_custom_call.1} parent=1 // pred_check
      _
    $region7: #{tpu_custom_call.1} parent=1 // pred_check_branch
      %18 = sbr.rel (0) target = $region9
    $region8: #{tpu_custom_call.1} parent=1 // pred_region
      %s20 = ssub.s32 512, 512
      %21 = vsyncadd [#allocation3], %s20
      %s22 = sshll.u32 [#allocation2], 4
      %s23 = int_to_ptr.vmem [resolvable:$true] %s22
      %28 = dma.hbm_to_vmem [thread:$0]  %s1, 512, %s23, [#allocation3], 128, 128, 8
    $region9: #{tpu_custom_call.1} parent=1 // pred_fallthru
      _
    // Predicated region
    $region10: #{tpu_custom_call.1} parent=1 // pred_check
      _
    $region11: #{tpu_custom_call.1} parent=1 // pred_check_branch
      %30 = sbr.rel (0) target = $region13
    $region12: #{tpu_custom_call.1} parent=1 // pred_region
      %s32 = ssub.s32 16, 16
      %33 = vsyncadd [#allocation6], %s32
      %s35 = sshll.u32 [#allocation5], 4
      %s36 = int_to_ptr.vmem [resolvable:$true] %s35
      %38 = dma.hbm_to_vmem [thread:$0]  %s2, 16, %s36, [#allocation6]
    $region13: #{tpu_custom_call.1} parent=1 // pred_fallthru
      _
    // Predicated region
    $region14: #{tpu_custom_call.1} parent=1 // pred_check
      _
    $region15: #{tpu_custom_call.1} parent=1 // pred_check_branch
      %40 = sbr.rel (0) target = $region17
    $region16: #{tpu_custom_call.1} parent=1 // pred_region
      %s42 = ssub.s32 2048, 2048
      %43 = vsyncadd [#allocation6], %s42
      %s44 = sshll.u32 [#allocation7], 4
      %s45 = int_to_ptr.vmem [resolvable:$true] %s44
      %50 = dma.hbm_to_vmem [thread:$0]  %s3, 2048, %s45, [#allocation6], 128, 128, 8
    $region17: #{tpu_custom_call.1} parent=1 // pred_fallthru
      _
    // Predicated region
    $region18: #{tpu_custom_call.1} parent=1 // pred_check
      _
    $region19: #{tpu_custom_call.1} parent=1 // pred_check_branch
      %52 = sbr.rel (0) target = $region21
    $region20: #{tpu_custom_call.1} parent=1 // pred_region
      _
    $region21: #{tpu_custom_call.1} parent=1 // pred_fallthru
      _
    // Predicated region
    $region22: #{tpu_custom_call.1} parent=1 // pred_check
      _
    $region23: #{tpu_custom_call.1} parent=1 // pred_check_branch
      %54 = sbr.rel (0) target = $region25
    $region24: #{tpu_custom_call.1} parent=1 // pred_region
      _
    $region25: #{tpu_custom_call.1} parent=1 // pred_fallthru
      _
    // Predicated region
    $region26: #{tpu_custom_call.1} parent=1 // pred_check
      _
    $region27: #{tpu_custom_call.1} parent=1 // pred_check_branch
      %56 = sbr.rel (0) target = $region29
    $region28: #{tpu_custom_call.1} parent=1 // pred_region
      _
    $region29: #{tpu_custom_call.1} parent=1 // pred_fallthru
      _
    // Predicated region
    $region30: #{tpu_custom_call.1} parent=1 // pred_check
      _
    $region31: #{tpu_custom_call.1} parent=1 // pred_check_branch
      %58 = sbr.rel (0) target = $region33
    $region32: #{tpu_custom_call.1} parent=1 // pred_region
      %59 = dma.done [#allocation3], 512
    $region33: #{tpu_custom_call.1} parent=1 // pred_fallthru
      _
    // Predicated region
    $region34: #{tpu_custom_call.1} parent=1 // pred_check
      _
    $region35: #{tpu_custom_call.1} parent=1 // pred_check_branch
      %61 = sbr.rel (0) target = $region37
    $region36: #{tpu_custom_call.1} parent=1 // pred_region
      %62 = dma.done [#allocation6], 16
    $region37: #{tpu_custom_call.1} parent=1 // pred_fallthru
      _
    // Predicated region
    $region38: #{tpu_custom_call.1} parent=1 // pred_check
      _
    $region39: #{tpu_custom_call.1} parent=1 // pred_check_branch
      %64 = sbr.rel (0) target = $region41
    $region40: #{tpu_custom_call.1} parent=1 // pred_region
      %65 = dma.done [#allocation6], 2048
    $region41: #{tpu_custom_call.1} parent=1 // pred_fallthru
      _
    %v66 = vld [vmem:[%s0] sm:$0xff]
    %v67 = vld [vmem:[#allocation2] sm:$0xff]
    %v68 = vld [vmem:[#allocation2 + $0x8] sm:$0xff]
    %v69 = vld [vmem:[#allocation2 + $0x10] sm:$0xff]
    %v70 = vld [vmem:[#allocation2 + $0x18] sm:$0xff]
    %v71 = vld [vmem:[#allocation5] sm:$0x1]
    %v73 = vlaneseq
    %v74 = vshrl.u32 %v73, 7
    %v75 = vsub.s32 0, %v74
    %v76 = vrot.slane %v71, %v75
    %vm78 = vcmask 261120
    %v80 = vsel %vm78, %v66, 0
    %82 = vmatprep.subr.mxu0 0.0
    %83 = vmatpush1.msra.mxu0 %v67
    %84 = vmatprep.subr.mxu0 0.0
    %85 = vmatpush1.msra.mxu0 %v68
    %86 = vmatprep.subr.mxu0 0.0
    %87 = vmatpush1.msra.mxu0 %v69
    %88 = vmatprep.subr.mxu0 0.0
    %89 = vmatpush1.msra.mxu0 %v70
    %90 = vmatprep.subr.mxu0 0.0
    %91 = vmatpush1.msra.mxu0 0.0
    %92 = vmatprep.subr.mxu0 0.0
    %93 = vmatpush1.msra.mxu0 0.0
    %94 = vmatprep.subr.mxu0 0.0
    %95 = vmatpush1.msra.mxu0 0.0
    %96 = vmatprep.subr.mxu0 0.0
    %97 = vmatpush1.msra.mxu0 0.0
    %98 = vmatprep.subr.mxu0 0.0
    %99 = vmatpush1.msra.mxu0 0.0
    %100 = vmatprep.subr.mxu0 0.0
    %101 = vmatpush1.msra.mxu0 0.0
    %102 = vmatprep.subr.mxu0 0.0
    %103 = vmatpush1.msra.mxu0 0.0
    %104 = vmatprep.subr.mxu0 0.0
    %105 = vmatpush1.msra.mxu0 0.0
    %106 = vmatprep.subr.mxu0 0.0
    %107 = vmatpush1.msra.mxu0 0.0
    %108 = vmatprep.subr.mxu0 0.0
    %109 = vmatpush1.msra.mxu0 0.0
    %110 = vmatprep.subr.mxu0 0.0
    %111 = vmatpush1.msra.mxu0 0.0
    %112 = vmatprep.subr.mxu0 0.0
    %113 = vmatpush1.msra.mxu0 0.0
    %114 = vmatprep.subr.mxu0 0.0
    %115 = vmatpush1.msra.mxu0 0.0
    %116 = vmatprep.subr.mxu0 0.0
    %117 = vmatpush1.msra.mxu0 0.0
    %118 = vmatprep.subr.mxu0 0.0
    %119 = vmatpush1.msra.mxu0 0.0
    %120 = vmatprep.subr.mxu0 0.0
    %121 = vmatpush1.msra.mxu0 0.0
    %122 = vmatprep.subr.mxu0 0.0
    %123 = vmatpush1.msra.mxu0 0.0
    %124 = vmatprep.subr.mxu0 0.0
    %125 = vmatpush1.msra.mxu0 0.0
    %126 = vmatprep.subr.mxu0 0.0
    %127 = vmatpush1.msra.mxu0 0.0
    %128 = vmatprep.subr.mxu0 0.0
    %129 = vmatpush1.msra.mxu0 0.0
    %130 = vmatprep.subr.mxu0 0.0
    %131 = vmatpush1.msra.mxu0 0.0
    %132 = vmatprep.subr.mxu0 0.0
    %133 = vmatpush1.msra.mxu0 0.0
    %134 = vmatprep.subr.mxu0 0.0
    %135 = vmatpush1.msra.mxu0 0.0
    %136 = vmatprep.subr.mxu0 0.0
    %137 = vmatpush1.msra.mxu0 0.0
    %138 = vmatprep.subr.mxu0 0.0
    %139 = vmatpush1.msra.mxu0 0.0
    %140 = vmatprep.subr.mxu0 0.0
    %141 = vmatpush1.msra.mxu0 0.0
    %142 = vmatprep.subr.mxu0 0.0
    %143 = vmatpush1.msra.mxu0 0.0
    %144 = vmatprep.subr.mxu0 0.0
    %145 = vmatpush1.msra.mxu0 0.0
    %146 = vmatprep.mubr.f32.mxu0 0.0
    %147 = vmatmul.mubr.f32.gmra.mrb[0].mxu0 %v80
    %v148 = vpop.f32.mrb[0].mxu0
    %v149 = vadd.f32 %v76, %v148
    %v150 = vpop.f32.mrb[0].mxu0
    %151 = vdwg.mxu0
    %v152 = vmax.f32 %v149, 0.0
    %v153 = vld [vmem:[#allocation7] sm:$0xff]
    %v154 = vld [vmem:[#allocation7 + $0x8] sm:$0xff]
    %v155 = vld [vmem:[#allocation7 + $0x10] sm:$0xff]
    %v156 = vld [vmem:[#allocation7 + $0x18] sm:$0xff]
    %v157 = vld [vmem:[#allocation7 + $0x20] sm:$0xff]
    %v158 = vld [vmem:[#allocation7 + $0x28] sm:$0xff]
    %v159 = vld [vmem:[#allocation7 + $0x30] sm:$0xff]
    %v160 = vld [vmem:[#allocation7 + $0x38] sm:$0xff]
    %v161 = vld [vmem:[#allocation7 + $0x40] sm:$0xff]
    %v162 = vld [vmem:[#allocation7 + $0x48] sm:$0xff]
    %v163 = vld [vmem:[#allocation7 + $0x50] sm:$0xff]
    %v164 = vld [vmem:[#allocation7 + $0x58] sm:$0xff]
    %v165 = vld [vmem:[#allocation7 + $0x60] sm:$0xff]
    %v166 = vld [vmem:[#allocation7 + $0x68] sm:$0xff]
    %v167 = vld [vmem:[#allocation7 + $0x70] sm:$0xff]
    %v168 = vld [vmem:[#allocation7 + $0x78] sm:$0xff]
    %v169 = vld [vmem:[%s4] sm:$0x1]
    %v171 = vlaneseq
    %v172 = vshrl.u32 %v171, 7
    %v173 = vsub.s32 0, %v172
    %v174 = vrot.slane %v169, %v173
    %176 = vmatprep.subr.mxu0 0.0
    %177 = vmatpush1.msra.mxu0 %v153
    %178 = vmatprep.subr.mxu0 0.0
    %179 = vmatpush1.msra.mxu0 %v154
    %180 = vmatprep.subr.mxu0 0.0
    %181 = vmatpush1.msra.mxu0 %v155
    %182 = vmatprep.subr.mxu0 0.0
    %183 = vmatpush1.msra.mxu0 %v156
    %184 = vmatprep.subr.mxu0 0.0
    %185 = vmatpush1.msra.mxu0 %v157
    %186 = vmatprep.subr.mxu0 0.0
    %187 = vmatpush1.msra.mxu0 %v158
    %188 = vmatprep.subr.mxu0 0.0
    %189 = vmatpush1.msra.mxu0 %v159
    %190 = vmatprep.subr.mxu0 0.0
    %191 = vmatpush1.msra.mxu0 %v160
    %192 = vmatprep.subr.mxu0 0.0
    %193 = vmatpush1.msra.mxu0 %v161
    %194 = vmatprep.subr.mxu0 0.0
    %195 = vmatpush1.msra.mxu0 %v162
    %196 = vmatprep.subr.mxu0 0.0
    %197 = vmatpush1.msra.mxu0 %v163
    %198 = vmatprep.subr.mxu0 0.0
    %199 = vmatpush1.msra.mxu0 %v164
    %200 = vmatprep.subr.mxu0 0.0
    %201 = vmatpush1.msra.mxu0 %v165
    %202 = vmatprep.subr.mxu0 0.0
    %203 = vmatpush1.msra.mxu0 %v166
    %204 = vmatprep.subr.mxu0 0.0
    %205 = vmatpush1.msra.mxu0 %v167
    %206 = vmatprep.subr.mxu0 0.0
    %207 = vmatpush1.msra.mxu0 %v168
    %208 = vmatprep.subr.mxu0 0.0
    %209 = vmatpush1.msra.mxu0 0.0
    %210 = vmatprep.subr.mxu0 0.0
    %211 = vmatpush1.msra.mxu0 0.0
    %212 = vmatprep.subr.mxu0 0.0
    %213 = vmatpush1.msra.mxu0 0.0
    %214 = vmatprep.subr.mxu0 0.0
    %215 = vmatpush1.msra.mxu0 0.0
    %216 = vmatprep.subr.mxu0 0.0
    %217 = vmatpush1.msra.mxu0 0.0
    %218 = vmatprep.subr.mxu0 0.0
    %219 = vmatpush1.msra.mxu0 0.0
    %220 = vmatprep.subr.mxu0 0.0
    %221 = vmatpush1.msra.mxu0 0.0
    %222 = vmatprep.subr.mxu0 0.0
    %223 = vmatpush1.msra.mxu0 0.0
    %224 = vmatprep.subr.mxu0 0.0
    %225 = vmatpush1.msra.mxu0 0.0
    %226 = vmatprep.subr.mxu0 0.0
    %227 = vmatpush1.msra.mxu0 0.0
    %228 = vmatprep.subr.mxu0 0.0
    %229 = vmatpush1.msra.mxu0 0.0
    %230 = vmatprep.subr.mxu0 0.0
    %231 = vmatpush1.msra.mxu0 0.0
    %232 = vmatprep.subr.mxu0 0.0
    %233 = vmatpush1.msra.mxu0 0.0
    %234 = vmatprep.subr.mxu0 0.0
    %235 = vmatpush1.msra.mxu0 0.0
    %236 = vmatprep.subr.mxu0 0.0
    %237 = vmatpush1.msra.mxu0 0.0
    %238 = vmatprep.subr.mxu0 0.0
    %239 = vmatpush1.msra.mxu0 0.0
    %240 = vmatprep.mubr.f32.mxu0 0.0
    %241 = vmatmul.mubr.f32.gmra.mrb[0].mxu0 %v152
    %v242 = vpop.f32.mrb[0].mxu0
    %v243 = vadd.f32 %v174, %v242
    %v244 = vpop.f32.mrb[0].mxu0
    %245 = vdwg.mxu0
    %v246 = vmax.f32 %v243, 0.0
    %v247 = vld [vmem:[%s5] sm:$0xff]
    %v248 = vld [vmem:[%s6] sm:$0xff]
    %250 = vset.pattern.permute.xlu0 0
    %251 = vperm.xlu0 %250, %v248
    %v252 = vpop.permute.xlu0 %251
    %254 = vmatprep.subr.mxu0 0.0
    %255 = vmatpush1.xpose.msra.mxu0 %v246
    %256 = vmatprep.subr.mxu0 0.0
    %257 = vmatpush1.xpose.msra.mxu0 0.0
    %258 = vmatprep.subr.mxu0 0.0
    %259 = vmatpush1.xpose.msra.mxu0 0.0
    %260 = vmatprep.subr.mxu0 0.0
    %261 = vmatpush1.xpose.msra.mxu0 0.0
    %262 = vmatprep.subr.mxu0 0.0
    %263 = vmatpush1.xpose.msra.mxu0 0.0
    %264 = vmatprep.subr.mxu0 0.0
    %265 = vmatpush1.xpose.msra.mxu0 0.0
    %266 = vmatprep.subr.mxu0 0.0
    %267 = vmatpush1.xpose.msra.mxu0 0.0
    %268 = vmatprep.subr.mxu0 0.0
    %269 = vmatpush1.xpose.msra.mxu0 0.0
    %270 = vmatprep.subr.mxu0 0.0
    %271 = vmatpush1.xpose.msra.mxu0 0.0
    %272 = vmatprep.subr.mxu0 0.0
    %273 = vmatpush1.xpose.msra.mxu0 0.0
    %274 = vmatprep.subr.mxu0 0.0
    %275 = vmatpush1.xpose.msra.mxu0 0.0
    %276 = vmatprep.subr.mxu0 0.0
    %277 = vmatpush1.xpose.msra.mxu0 0.0
    %278 = vmatprep.subr.mxu0 0.0
    %279 = vmatpush1.xpose.msra.mxu0 0.0
    %280 = vmatprep.subr.mxu0 0.0
    %281 = vmatpush1.xpose.msra.mxu0 0.0
    %282 = vmatprep.subr.mxu0 0.0
    %283 = vmatpush1.xpose.msra.mxu0 0.0
    %284 = vmatprep.subr.mxu0 0.0
    %285 = vmatpush1.xpose.msra.mxu0 0.0
    %286 = vmatprep.subr.mxu0 0.0
    %287 = vmatpush1.xpose.msra.mxu0 0.0
    %288 = vmatprep.subr.mxu0 0.0
    %289 = vmatpush1.xpose.msra.mxu0 0.0
    %290 = vmatprep.subr.mxu0 0.0
    %291 = vmatpush1.xpose.msra.mxu0 0.0
    %292 = vmatprep.subr.mxu0 0.0
    %293 = vmatpush1.xpose.msra.mxu0 0.0
    %294 = vmatprep.subr.mxu0 0.0
    %295 = vmatpush1.xpose.msra.mxu0 0.0
    %296 = vmatprep.subr.mxu0 0.0
    %297 = vmatpush1.xpose.msra.mxu0 0.0
    %298 = vmatprep.subr.mxu0 0.0
    %299 = vmatpush1.xpose.msra.mxu0 0.0
    %300 = vmatprep.subr.mxu0 0.0
    %301 = vmatpush1.xpose.msra.mxu0 0.0
    %302 = vmatprep.subr.mxu0 0.0
    %303 = vmatpush1.xpose.msra.mxu0 0.0
    %304 = vmatprep.subr.mxu0 0.0
    %305 = vmatpush1.xpose.msra.mxu0 0.0
    %306 = vmatprep.subr.mxu0 0.0
    %307 = vmatpush1.xpose.msra.mxu0 0.0
    %308 = vmatprep.subr.mxu0 0.0
    %309 = vmatpush1.xpose.msra.mxu0 0.0
    %310 = vmatprep.subr.mxu0 0.0
    %311 = vmatpush1.xpose.msra.mxu0 0.0
    %312 = vmatprep.subr.mxu0 0.0
    %313 = vmatpush1.xpose.msra.mxu0 0.0
    %314 = vmatprep.subr.mxu0 0.0
    %315 = vmatpush1.xpose.msra.mxu0 0.0
    %316 = vmatprep.subr.mxu0 0.0
    %317 = vmatpush1.xpose.msra.mxu0 0.0
    %318 = vmatprep.mubr.f32.mxu0 0.0
    %319 = vmatmul.mubr.f32.gmra.mrb[0].mxu0 %v247
    %v320 = vpop.f32.mrb[0].mxu0
    %v321 = vadd.f32 %v252, %v320
    %v322 = vpop.f32.mrb[0].mxu0
    %323 = vdwg.mxu0
    %v324 = vlaneseq
    %v325 = vshrl.u32 %v324, 7
    %vm326 = vcmp.eq.s32.totalorder %v325, 0
    %v327 = vmul.f32 %v321, 0.5
    %v328 = vsel %vm326, %v321, %v327
    %v329 = vtanh.pop %v328
    %v330 = vmul.f32 %v329, 0.5
    %v331 = vadd.f32 %v330, 0.5
    %v332 = vsel %vm326, %v329, %v331
    %vm333 = vcmask 64512
    %334 = vst.msk [vmem:[#allocation8] sm:$0xff] %vm333, %v332
    // Predicated region
    $region42: #{tpu_custom_call.1} parent=1 // pred_check
      _
    $region43: #{tpu_custom_call.1} parent=1 // pred_check_branch
      %336 = sbr.rel (0) target = $region45
    $region44: #{tpu_custom_call.1} parent=1 // pred_region
      %s338 = ssub.s32 128, 128
      %339 = vsyncadd [#allocation4], %s338
      %s341 = sshll.u32 [#allocation8], 4
      %s342 = int_to_ptr.vmem [resolvable:$true] %s341
      %344 = dma.vmem_to_hbm [thread:$0]  %s342, 128, %s7, [#allocation4]
    $region45: #{tpu_custom_call.1} parent=1 // pred_fallthru
      _
    // Predicated region
    $region46: #{tpu_custom_call.1} parent=1 // pred_check
      _
    $region47: #{tpu_custom_call.1} parent=1 // pred_check_branch
      %346 = sbr.rel (0) target = $region49
    $region48: #{tpu_custom_call.1} parent=1 // pred_region
      %347 = dma.done [#allocation4], 128
    $region49: #{tpu_custom_call.1} parent=1 // pred_fallthru
      _
    %348 = vsyncpa [#allocation3], 1
    %349 = vsyncpa [#allocation6], 1
    %350 = vsyncpa [#allocation4], 1

</llo_original>
